<compile_context>
chip_gen: v6e
topology: v6e:2x2x1
jax: 0.10.0
libtpu: 0.0.40
codegen_flags: <defaults>
</compile_context>

<pallas_src>
import functools

import jax
import jax.numpy as jnp
import numpy as np
from jax.experimental import pallas as pl
from jax.experimental.pallas import tpu as pltpu

try:
    from scipy.optimize import linear_sum_assignment
    _HAVE_SCIPY = True
except Exception:  # pragma: no cover
    _HAVE_SCIPY = False
    # TODO(synk): linear_sum_assignment (and the 'gs' Sinkhorn variant) are sequential,
    # host-side post-processing with no clean Pallas equivalent; without scipy we only
    # produce the cost blocks.


def _round_up(x, m):
    return ((x + m - 1) // m) * m


def _cdiv(a, b):
    return -(-a // b)


def _cost_block_kernel(logits_ref, onehot_ref, qbox_ref, tboxT_ref, c_ref,
                       *, cost_bbox_w, cost_giou_w, include_bbox):
    # ---- classification cost: -cost_class * softmax(logits) @ one_hot(tgt_ids) (f32 MXU) ----
    logits = logits_ref[...].astype(jnp.float32)                        # [tq, C]
    m = jnp.max(logits, axis=-1, keepdims=True)
    e = jnp.exp(logits - m)
    denom = jnp.sum(e, axis=-1, keepdims=True)
    prob = e * pl.reciprocal(denom, approx=True)                        # softmax  [tq, C]
    # one-hot already carries (-cost_class); f32 x f32 keeps the class cost exact.
    cost = jnp.dot(prob, onehot_ref[...].astype(jnp.float32),
                   preferred_element_type=jnp.float32)                  # [tq, T_pad]

    tq, tp = cost.shape

    # ---- box coordinates ----
    qb = qbox_ref[...].astype(jnp.float32)                              # [tq, 4]
    tb = tboxT_ref[...].astype(jnp.float32)                             # [4, T_pad]
    qx0c = qb[:, 0:1]; qy0c = qb[:, 1:2]; qx1c = qb[:, 2:3]; qy1c = qb[:, 3:4]
    tx0r = tb[0:1, :]; ty0r = tb[1:2, :]; tx1r = tb[2:3, :]; ty1r = tb[3:4, :]

    # areas computed at small shape first
    area1c = (qx1c - qx0c) * (qy1c - qy0c)                              # [tq, 1]
    area2r = (tx1r - tx0r) * (ty1r - ty0r)                              # [1, T_pad]

    # hoist the lane/sublane broadcasts once (JAX does not CSE broadcast_in_dim)
    shape = (tq, tp)
    qx0 = jnp.broadcast_to(qx0c, shape); qy0 = jnp.broadcast_to(qy0c, shape)
    qx1 = jnp.broadcast_to(qx1c, shape); qy1 = jnp.broadcast_to(qy1c, shape)
    tx0 = jnp.broadcast_to(tx0r, shape); ty0 = jnp.broadcast_to(ty0r, shape)
    tx1 = jnp.broadcast_to(tx1r, shape); ty1 = jnp.broadcast_to(ty1r, shape)
    area1 = jnp.broadcast_to(area1c, shape)
    area2 = jnp.broadcast_to(area2r, shape)

    # ---- generalized IoU (divides go to the EUP via approx reciprocal) ----
    ltx = jnp.maximum(qx0, tx0); lty = jnp.maximum(qy0, ty0)
    rbx = jnp.minimum(qx1, tx1); rby = jnp.minimum(qy1, ty1)
    inter = jnp.maximum(rbx - ltx, 0.0) * jnp.maximum(rby - lty, 0.0)
    union = area1 + area2 - inter
    iou = inter * pl.reciprocal(union, approx=True)
    eltx = jnp.minimum(qx0, tx0); elty = jnp.minimum(qy0, ty0)
    erbx = jnp.maximum(qx1, tx1); erby = jnp.maximum(qy1, ty1)
    enclose = jnp.maximum(erbx - eltx, 0.0) * jnp.maximum(erby - elty, 0.0)
    # -giou = (enclose - union)/enclose - iou
    neg_giou = (enclose - union) * pl.reciprocal(enclose, approx=True) - iou

    cost = cost + cost_giou_w * neg_giou

    # ---- L1 cdist (cost_bbox weight already folded into the coordinates when > 0) ----
    if include_bbox:
        cost_bbox = (jnp.abs(qx0 - tx0) + jnp.abs(qy0 - ty0)
                     + jnp.abs(qx1 - tx1) + jnp.abs(qy1 - ty1))
        if cost_bbox_w == 1.0:
            cost = cost + cost_bbox
        else:
            cost = cost + cost_bbox_w * cost_bbox

    c_ref[...] = cost


def compute_block_cost(pred_logits, pred_boxes, tgt_labels_padded, tgt_boxes_padded,
                       cost_class=1.0, cost_bbox=1.0, cost_giou=1.0):
    """Per-batch (block-diagonal) cost matrices.

    pred_logits:       [bs, nq, C]
    pred_boxes:        [bs, nq, 4]
    tgt_labels_padded: [bs, T_pad] int32, -1 in padded slots (one_hot(-1) == 0)
    tgt_boxes_padded:  [bs, T_pad, 4] float32, padded slots must be valid (unit) boxes
    Returns            [bs, nq, T_pad] float32; only columns < sizes[b] are meaningful.
    """
    bs, nq, C = pred_logits.shape
    T_pad = int(tgt_labels_padded.shape[1])
    assert T_pad % 128 == 0, "target axis must be lane-dense (multiple of 128)"

    # ---- adaptive query tiling: no wasted rows, >=2 grid steps for megacore when possible ----
    nq8 = _round_up(nq, 8)
    c_lanepad = _round_up(C, 128)
    c_subpad = _round_up(C, 8)
    logits_isz = jnp.dtype(pred_logits.dtype).itemsize

    def footprint(tq):
        # double-buffered pipeline buffers (inputs + output) per grid step
        return 2 * (tq * c_lanepad * logits_isz      # logits tile (lane padded)
                    + tq * 128 * 4                   # query boxes (lane padded)
                    + c_subpad * T_pad * 4           # one-hot (resident but buffered)
                    + 8 * T_pad * 4                  # target boxes^T
                    + tq * T_pad * 4)                # output tile

    n_q_tiles = max(1, _cdiv(nq8, 256))
    if bs == 1 and n_q_tiles == 1 and nq8 >= 16:
        n_q_tiles = 2  # give the v7x megacore >= 2 steps even for a single image
    tile_q = _round_up(_cdiv(nq8, n_q_tiles), 8)
    vmem_budget = 12 << 20  # fits v5e's 16 MiB scoped default with headroom
    while footprint(tile_q) > vmem_budget and tile_q > 8:
        n_q_tiles += 1
        tile_q = _round_up(_cdiv(nq8, n_q_tiles), 8)
    nq_pad = tile_q * n_q_tiles

    # ---- prepare padded / weighted inputs ----
    logits = pred_logits
    if nq_pad > nq:
        logits = jnp.pad(logits, ((0, 0), (0, nq_pad - nq), (0, 0)))

    fold_bbox = float(cost_bbox) > 0.0
    include_bbox = float(cost_bbox) != 0.0
    box_scale = float(cost_bbox) if fold_bbox else 1.0
    cost_bbox_w = 1.0 if fold_bbox else float(cost_bbox)

    qboxes = pred_boxes.astype(jnp.float32)
    if nq_pad > nq:
        pad_q = jnp.broadcast_to(jnp.array([0.0, 0.0, 1.0, 1.0], jnp.float32),
                                 (bs, nq_pad - nq, 4))
        qboxes = jnp.concatenate([qboxes, pad_q], axis=1)
    if box_scale != 1.0:
        qboxes = qboxes * box_scale                                    # GIoU is scale-invariant

    tboxes = tgt_boxes_padded.astype(jnp.float32)
    if box_scale != 1.0:
        tboxes = tboxes * box_scale
    tboxT = jnp.transpose(tboxes, (0, 2, 1))                           # [bs, 4, T_pad]

    # (-cost_class) folded into the one-hot; kept in f32 so the class cost is exact.
    onehot = (-float(cost_class)) * jax.nn.one_hot(tgt_labels_padded, C, dtype=jnp.float32)
    onehot = jnp.transpose(onehot, (0, 2, 1))                          # [bs, C, T_pad]

    kernel = functools.partial(_cost_block_kernel,
                               cost_bbox_w=cost_bbox_w,
                               cost_giou_w=float(cost_giou),
                               include_bbox=include_bbox)

    cost_estimate = pl.CostEstimate(
        flops=bs * nq_pad * T_pad * (2 * C + 40),
        transcendentals=bs * nq_pad * (C + 2 * T_pad),   # softmax exps + 2 approx recips / elem
        bytes_accessed=(logits.size * logits_isz
                        + qboxes.size * 4 + onehot.size * 4 + tboxT.size * 4
                        + bs * nq_pad * T_pad * 4),
    )

    comp_kwargs = dict(dimension_semantics=("parallel", "parallel"))
    fp = footprint(tile_q)
    if fp > vmem_budget:  # tile_q hit the minimum and is still big -> raise the scoped limit
        comp_kwargs["vmem_limit_bytes"] = int(min(2 * fp, 56 << 20))

    c_block = pl.pallas_call(
        kernel,
        out_shape=jax.ShapeDtypeStruct((bs, nq_pad, T_pad), jnp.float32),
        grid=(bs, n_q_tiles),
        in_specs=[
            pl.BlockSpec((None, tile_q, C), lambda b, qi: (b, qi, 0)),      # logits tile
            pl.BlockSpec((None, C, T_pad), lambda b, qi: (b, 0, 0)),        # per-batch one-hot
            pl.BlockSpec((None, tile_q, 4), lambda b, qi: (b, qi, 0)),      # query boxes tile
            pl.BlockSpec((None, 4, T_pad), lambda b, qi: (b, 0, 0)),        # per-batch tgt boxes^T
        ],
        out_specs=pl.BlockSpec((None, tile_q, T_pad), lambda b, qi: (b, qi, 0)),
        compiler_params=pltpu.CompilerParams(**comp_kwargs),
        cost_estimate=cost_estimate,
    )(logits, onehot, qboxes, tboxT)

    return c_block[:, :nq, :]


def hungarian_matcher_forward(outputs, targets,
                              cost_class=1.0, cost_bbox=1.0, cost_giou=1.0):
    """Mirrors HungarianMatcher.forward (method='lsa'): returns list of (index_i, index_j)."""
    pred_logits = outputs["pred_logits"]
    pred_boxes = outputs["pred_boxes"]
    bs = pred_logits.shape[0]
    sizes = [int(v["boxes"].shape[0]) for v in targets]
    T_max = max(sizes) if sizes and max(sizes) > 0 else 1
    T_pad = max(128, _round_up(T_max, 128))

    labels_padded = np.full((bs, T_pad), -1, dtype=np.int32)
    boxes_padded = np.tile(np.array([0.0, 0.0, 1.0, 1.0], np.float32), (bs, T_pad, 1))
    for b, v in enumerate(targets):
        s = sizes[b]
        if s:
            labels_padded[b, :s] = np.asarray(v["labels"], dtype=np.int32)
            boxes_padded[b, :s] = np.asarray(v["boxes"], dtype=np.float32)

    C_block = compute_block_cost(pred_logits, pred_boxes,
                                 jnp.asarray(labels_padded), jnp.asarray(boxes_padded),
                                 cost_class, cost_bbox, cost_giou)
    C_host = np.asarray(jax.block_until_ready(C_block))   # only the per-batch real columns matter

    indices = []
    if _HAVE_SCIPY:
        for b in range(bs):
            r, c = linear_sum_assignment(C_host[b, :, :sizes[b]])
            indices.append((np.asarray(r, dtype=np.int64), np.asarray(c, dtype=np.int64)))
    return indices


def _reference_cost_matrix(pred_logits, pred_boxes, tgt_ids, tgt_boxes,
                           cost_class=1.0, cost_bbox=1.0, cost_giou=1.0):
    """Pure-jnp reference (full flattened matrix, like the PyTorch module) for validation."""
    bs, nq, nc = pred_logits.shape
    out_prob = jax.nn.softmax(pred_logits.reshape(-1, nc).astype(jnp.float32), axis=-1)
    out_bbox = pred_boxes.reshape(-1, 4).astype(jnp.float32)
    cc = -out_prob[:, tgt_ids]
    cb = jnp.sum(jnp.abs(out_bbox[:, None, :] - tgt_boxes[None, :, :]), axis=-1)
    a1 = (out_bbox[:, 2] - out_bbox[:, 0]) * (out_bbox[:, 3] - out_bbox[:, 1])
    a2 = (tgt_boxes[:, 2] - tgt_boxes[:, 0]) * (tgt_boxes[:, 3] - tgt_boxes[:, 1])
    lt = jnp.maximum(out_bbox[:, None, :2], tgt_boxes[None, :, :2])
    rb = jnp.minimum(out_bbox[:, None, 2:], tgt_boxes[None, :, 2:])
    wh = jnp.clip(rb - lt, 0.0)
    inter = wh[..., 0] * wh[..., 1]
    union = a1[:, None] + a2[None, :] - inter
    iou = inter / union
    lt2 = jnp.minimum(out_bbox[:, None, :2], tgt_boxes[None, :, :2])
    rb2 = jnp.maximum(out_bbox[:, None, 2:], tgt_boxes[None, :, 2:])
    wh2 = jnp.clip(rb2 - lt2, 0.0)
    area = wh2[..., 0] * wh2[..., 1]
    giou = iou - (area - union) / area
    C = cost_bbox * cb + cost_class * cc + cost_giou * (-giou)
    return C.reshape(bs, nq, -1)


def _make_boxes(key, n):
    k1, k2, k3, k4 = jax.random.split(key, 4)
    x0 = jax.random.uniform(k1, (n,), minval=0.0, maxval=0.5)
    y0 = jax.random.uniform(k2, (n,), minval=0.0, maxval=0.5)
    w = jax.random.uniform(k3, (n,), minval=0.05, maxval=0.4)
    h = jax.random.uniform(k4, (n,), minval=0.05, maxval=0.4)
    return jnp.stack([x0, y0, x0 + w, y0 + h], axis=-1).astype(jnp.float32)


if __name__ == "__main__":
    key = jax.random.PRNGKey(0)
    bs, num_queries, num_classes = 2, 8, 16
    sizes = [3, 5]  # targets per batch element

    k1, k2, k3, k4 = jax.random.split(key, 4)
    pred_logits = jax.random.normal(k1, (bs, num_queries, num_classes), dtype=jnp.float32)
    pred_boxes = _make_boxes(k2, bs * num_queries).reshape(bs, num_queries, 4)

    targets = []
    tkeys = jax.random.split(k3, len(sizes))
    lkeys = jax.random.split(k4, len(sizes))
    for i, s in enumerate(sizes):
        targets.append({
            "labels": jax.random.randint(lkeys[i], (s,), 0, num_classes, dtype=jnp.int32),
            "boxes": _make_boxes(tkeys[i], s),
        })

    outputs = {"pred_logits": pred_logits, "pred_boxes": pred_boxes}

    # Run the matcher (Pallas cost blocks + host-side linear_sum_assignment).
    indices = hungarian_matcher_forward(outputs, targets)

    # Validate the block-diagonal Pallas costs against the full pure-JAX reference.
    T_pad = max(128, _round_up(max(sizes), 128))
    labels_padded = np.full((bs, T_pad), -1, dtype=np.int32)
    boxes_padded = np.tile(np.array([0.0, 0.0, 1.0, 1.0], np.float32), (bs, T_pad, 1))
    for b, v in enumerate(targets):
        labels_padded[b, :sizes[b]] = np.asarray(v["labels"], dtype=np.int32)
        boxes_padded[b, :sizes[b]] = np.asarray(v["boxes"], dtype=np.float32)
    C_block = jax.block_until_ready(
        compute_block_cost(pred_logits, pred_boxes,
                           jnp.asarray(labels_padded), jnp.asarray(boxes_padded)))
    C_block_np = np.asarray(C_block)

    tgt_ids = jnp.concatenate([v["labels"] for v in targets])
    tgt_boxes = jnp.concatenate([v["boxes"] for v in targets])
    C_ref = np.asarray(_reference_cost_matrix(pred_logits, pred_boxes, tgt_ids, tgt_boxes))
    offs = np.cumsum([0] + sizes)
    for b in range(bs):
        np.testing.assert_allclose(C_block_np[b, :, :sizes[b]],
                                   C_ref[b, :, offs[b]:offs[b + 1]],
                                   rtol=5e-3, atol=5e-3)

    # Sanity-check the assignments have the right shapes (min(nq, sizes[b]) matches each).
    if indices:
        for b, (r, c) in enumerate(indices):
            assert len(r) == len(c) == min(num_queries, sizes[b])

    print("KERNEL_OK")
</pallas_src>

<mosaic_0001>
module attributes {stable_mosaic.version = 11 : i64} {
  func.func @_cost_block_kernel(%arg0: i32, %arg1: i32, %arg2: memref<1x8x16xf32, #tpu.memory_space<vmem>>, %arg3: memref<1x16x128xf32, #tpu.memory_space<vmem>>, %arg4: memref<1x8x4xf32, #tpu.memory_space<vmem>>, %arg5: memref<1x4x128xf32, #tpu.memory_space<vmem>>, %arg6: memref<1x8x128xf32, #tpu.memory_space<vmem>>) attributes {dimension_semantics = [#tpu.dimension_semantics<parallel>, #tpu.dimension_semantics<parallel>], iteration_bounds = array<i64: 2, 1>, scalar_prefetch = 0 : i64, scratch_operands = 0 : i64, tpu.core_type = #tpu.core_type<tc>, window_params = [{transform_indices = @transform_0, window_bounds = array<i64: 1, 8, 16>}, {transform_indices = @transform_1, window_bounds = array<i64: 1, 16, 128>}, {transform_indices = @transform_2, window_bounds = array<i64: 1, 8, 4>}, {transform_indices = @transform_3, window_bounds = array<i64: 1, 4, 128>}, {transform_indices = @transform_4, window_bounds = array<i64: 1, 8, 128>}]} {
    %c0 = arith.constant 0 : index
    %c0_0 = arith.constant 0 : index
    %c0_1 = arith.constant 0 : index
    %0 = vector.load %arg2[%c0, %c0_0, %c0_1] : memref<1x8x16xf32, #tpu.memory_space<vmem>>, vector<1x8x16xf32>
    %1 = vector.shape_cast %0 : vector<1x8x16xf32> to vector<8x16xf32>
    %cst = arith.constant dense<0xFF800000> : vector<8xf32>
    %2 = vector.multi_reduction <maximumf>, %1, %cst [1] : vector<8x16xf32> to vector<8xf32>
    %3 = vector.shape_cast %2 : vector<8xf32> to vector<8x1xf32>
    %4 = vector.broadcast %3 : vector<8x1xf32> to vector<8x16xf32>
    %5 = arith.subf %1, %4 : vector<8x16xf32>
    %6 = math.exp %5 : vector<8x16xf32>
    %cst_2 = arith.constant dense<0.000000e+00> : vector<8xf32>
    %7 = vector.multi_reduction <add>, %6, %cst_2 [1] : vector<8x16xf32> to vector<8xf32>
    %8 = vector.shape_cast %7 : vector<8xf32> to vector<8x1xf32>
    %9 = tpu.reciprocal %8 {approx = true} : vector<8x1xf32> -> vector<8x1xf32>
    %10 = vector.broadcast %9 : vector<8x1xf32> to vector<8x16xf32>
    %11 = arith.mulf %6, %10 : vector<8x16xf32>
    %c0_3 = arith.constant 0 : index
    %c0_4 = arith.constant 0 : index
    %c0_5 = arith.constant 0 : index
    %12 = vector.load %arg3[%c0_3, %c0_4, %c0_5] : memref<1x16x128xf32, #tpu.memory_space<vmem>>, vector<1x16x128xf32>
    %13 = vector.shape_cast %12 : vector<1x16x128xf32> to vector<16x128xf32>
    %cst_6 = arith.constant dense<0.000000e+00> : vector<8x128xf32>
    %14 = tpu.matmul %11, %13, %cst_6 {dimension_numbers = #tpu.dot_dimension_numbers<[1], [0], [0], [1], [0, 0, 1, 1], [], []>} : vector<8x16xf32>, vector<16x128xf32>, vector<8x128xf32> -> vector<8x128xf32>
    %c0_7 = arith.constant 0 : index
    %c0_8 = arith.constant 0 : index
    %c0_9 = arith.constant 0 : index
    %15 = vector.load %arg4[%c0_7, %c0_8, %c0_9] : memref<1x8x4xf32, #tpu.memory_space<vmem>>, vector<1x8x4xf32>
    %16 = vector.shape_cast %15 : vector<1x8x4xf32> to vector<8x4xf32>
    %c0_10 = arith.constant 0 : index
    %c0_11 = arith.constant 0 : index
    %c0_12 = arith.constant 0 : index
    %17 = vector.load %arg5[%c0_10, %c0_11, %c0_12] : memref<1x4x128xf32, #tpu.memory_space<vmem>>, vector<1x4x128xf32>
    %18 = vector.shape_cast %17 : vector<1x4x128xf32> to vector<4x128xf32>
    %19 = vector.extract_strided_slice %16 {offsets = [0, 0], sizes = [8, 1], strides = [1, 1]} : vector<8x4xf32> to vector<8x1xf32>
    %20 = vector.extract_strided_slice %16 {offsets = [0, 1], sizes = [8, 1], strides = [1, 1]} : vector<8x4xf32> to vector<8x1xf32>
    %21 = vector.extract_strided_slice %16 {offsets = [0, 2], sizes = [8, 1], strides = [1, 1]} : vector<8x4xf32> to vector<8x1xf32>
    %22 = vector.extract_strided_slice %16 {offsets = [0, 3], sizes = [8, 1], strides = [1, 1]} : vector<8x4xf32> to vector<8x1xf32>
    %23 = vector.extract_strided_slice %18 {offsets = [0, 0], sizes = [1, 128], strides = [1, 1]} : vector<4x128xf32> to vector<1x128xf32>
    %24 = vector.extract_strided_slice %18 {offsets = [1, 0], sizes = [1, 128], strides = [1, 1]} : vector<4x128xf32> to vector<1x128xf32>
    %25 = vector.extract_strided_slice %18 {offsets = [2, 0], sizes = [1, 128], strides = [1, 1]} : vector<4x128xf32> to vector<1x128xf32>
    %26 = vector.extract_strided_slice %18 {offsets = [3, 0], sizes = [1, 128], strides = [1, 1]} : vector<4x128xf32> to vector<1x128xf32>
    %27 = arith.subf %21, %19 : vector<8x1xf32>
    %28 = arith.subf %22, %20 : vector<8x1xf32>
    %29 = arith.mulf %27, %28 : vector<8x1xf32>
    %30 = arith.subf %25, %23 : vector<1x128xf32>
    %31 = arith.subf %26, %24 : vector<1x128xf32>
    %32 = arith.mulf %30, %31 : vector<1x128xf32>
    %33 = vector.shape_cast %19 : vector<8x1xf32> to vector<8x1xf32>
    %34 = vector.broadcast %33 : vector<8x1xf32> to vector<8x128xf32>
    %35 = vector.shape_cast %20 : vector<8x1xf32> to vector<8x1xf32>
    %36 = vector.broadcast %35 : vector<8x1xf32> to vector<8x128xf32>
    %37 = vector.shape_cast %21 : vector<8x1xf32> to vector<8x1xf32>
    %38 = vector.broadcast %37 : vector<8x1xf32> to vector<8x128xf32>
    %39 = vector.shape_cast %22 : vector<8x1xf32> to vector<8x1xf32>
    %40 = vector.broadcast %39 : vector<8x1xf32> to vector<8x128xf32>
    %41 = vector.shape_cast %23 : vector<1x128xf32> to vector<1x128xf32>
    %42 = vector.broadcast %41 : vector<1x128xf32> to vector<8x128xf32>
    %43 = vector.shape_cast %24 : vector<1x128xf32> to vector<1x128xf32>
    %44 = vector.broadcast %43 : vector<1x128xf32> to vector<8x128xf32>
    %45 = vector.shape_cast %25 : vector<1x128xf32> to vector<1x128xf32>
    %46 = vector.broadcast %45 : vector<1x128xf32> to vector<8x128xf32>
    %47 = vector.shape_cast %26 : vector<1x128xf32> to vector<1x128xf32>
    %48 = vector.broadcast %47 : vector<1x128xf32> to vector<8x128xf32>
    %49 = vector.shape_cast %29 : vector<8x1xf32> to vector<8x1xf32>
    %50 = vector.broadcast %49 : vector<8x1xf32> to vector<8x128xf32>
    %51 = vector.shape_cast %32 : vector<1x128xf32> to vector<1x128xf32>
    %52 = vector.broadcast %51 : vector<1x128xf32> to vector<8x128xf32>
    %53 = arith.maximumf %34, %42 : vector<8x128xf32>
    %54 = arith.maximumf %36, %44 : vector<8x128xf32>
    %55 = arith.minimumf %38, %46 : vector<8x128xf32>
    %56 = arith.minimumf %40, %48 : vector<8x128xf32>
    %57 = arith.subf %55, %53 : vector<8x128xf32>
    %cst_13 = arith.constant 0.000000e+00 : f32
    %58 = vector.broadcast %cst_13 : f32 to vector<8x128xf32>
    %59 = arith.maximumf %57, %58 : vector<8x128xf32>
    %60 = arith.subf %56, %54 : vector<8x128xf32>
    %cst_14 = arith.constant 0.000000e+00 : f32
    %61 = vector.broadcast %cst_14 : f32 to vector<8x128xf32>
    %62 = arith.maximumf %60, %61 : vector<8x128xf32>
    %63 = arith.mulf %59, %62 : vector<8x128xf32>
    %64 = arith.addf %50, %52 : vector<8x128xf32>
    %65 = arith.subf %64, %63 : vector<8x128xf32>
    %66 = tpu.reciprocal %65 {approx = true} : vector<8x128xf32> -> vector<8x128xf32>
    %67 = arith.mulf %63, %66 : vector<8x128xf32>
    %68 = arith.minimumf %34, %42 : vector<8x128xf32>
    %69 = arith.minimumf %36, %44 : vector<8x128xf32>
    %70 = arith.maximumf %38, %46 : vector<8x128xf32>
    %71 = arith.maximumf %40, %48 : vector<8x128xf32>
    %72 = arith.subf %70, %68 : vector<8x128xf32>
    %cst_15 = arith.constant 0.000000e+00 : f32
    %73 = vector.broadcast %cst_15 : f32 to vector<8x128xf32>
    %74 = arith.maximumf %72, %73 : vector<8x128xf32>
    %75 = arith.subf %71, %69 : vector<8x128xf32>
    %cst_16 = arith.constant 0.000000e+00 : f32
    %76 = vector.broadcast %cst_16 : f32 to vector<8x128xf32>
    %77 = arith.maximumf %75, %76 : vector<8x128xf32>
    %78 = arith.mulf %74, %77 : vector<8x128xf32>
    %79 = arith.subf %78, %65 : vector<8x128xf32>
    %80 = tpu.reciprocal %78 {approx = true} : vector<8x128xf32> -> vector<8x128xf32>
    %81 = arith.mulf %79, %80 : vector<8x128xf32>
    %82 = arith.subf %81, %67 : vector<8x128xf32>
    %cst_17 = arith.constant 1.000000e+00 : f32
    %83 = vector.broadcast %cst_17 : f32 to vector<8x128xf32>
    %84 = arith.mulf %83, %82 : vector<8x128xf32>
    %85 = arith.addf %14, %84 : vector<8x128xf32>
    %86 = arith.subf %34, %42 : vector<8x128xf32>
    %87 = math.absf %86 : vector<8x128xf32>
    %88 = arith.subf %36, %44 : vector<8x128xf32>
    %89 = math.absf %88 : vector<8x128xf32>
    %90 = arith.addf %87, %89 : vector<8x128xf32>
    %91 = arith.subf %38, %46 : vector<8x128xf32>
    %92 = math.absf %91 : vector<8x128xf32>
    %93 = arith.addf %90, %92 : vector<8x128xf32>
    %94 = arith.subf %40, %48 : vector<8x128xf32>
    %95 = math.absf %94 : vector<8x128xf32>
    %96 = arith.addf %93, %95 : vector<8x128xf32>
    %97 = arith.addf %85, %96 : vector<8x128xf32>
    %c0_18 = arith.constant 0 : index
    %c0_19 = arith.constant 0 : index
    %c0_20 = arith.constant 0 : index
    %98 = vector.load %arg6[%c0_18, %c0_19, %c0_20] : memref<1x8x128xf32, #tpu.memory_space<vmem>>, vector<1x8x128xf32>
    %99 = vector.shape_cast %98 : vector<1x8x128xf32> to vector<8x128xf32>
    %100 = vector.shape_cast %97 : vector<8x128xf32> to vector<1x8x128xf32>
    tpu.vector_store %arg6[%c0_18, %c0_19, %c0_20], %100 {strides = array<i32>} : memref<1x8x128xf32, #tpu.memory_space<vmem>>, vector<1x8x128xf32>,
    return
  }
  func.func @transform_0(%arg0: i32, %arg1: i32) -> (i32, i32, i32) {
    %c0_i32 = arith.constant 0 : i32
    %c0_i32_0 = arith.constant 0 : i32
    return %arg0, %arg1, %c0_i32 : i32, i32, i32
  }
  func.func @transform_1(%arg0: i32, %arg1: i32) -> (i32, i32, i32) {
    %c0_i32 = arith.constant 0 : i32
    %c0_i32_0 = arith.constant 0 : i32
    %c0_i32_1 = arith.constant 0 : i32
    return %arg0, %c0_i32, %c0_i32_0 : i32, i32, i32
  }
  func.func @transform_2(%arg0: i32, %arg1: i32) -> (i32, i32, i32) {
    %c0_i32 = arith.constant 0 : i32
    %c0_i32_0 = arith.constant 0 : i32
    return %arg0, %arg1, %c0_i32 : i32, i32, i32
  }
  func.func @transform_3(%arg0: i32, %arg1: i32) -> (i32, i32, i32) {
    %c0_i32 = arith.constant 0 : i32
    %c0_i32_0 = arith.constant 0 : i32
    %c0_i32_1 = arith.constant 0 : i32
    return %arg0, %c0_i32, %c0_i32_0 : i32, i32, i32
  }
  func.func @transform_4(%arg0: i32, %arg1: i32) -> (i32, i32, i32) {
    %c0_i32 = arith.constant 0 : i32
    %c0_i32_0 = arith.constant 0 : i32
    return %arg0, %arg1, %c0_i32 : i32, i32, i32
  }
}

</mosaic_0001>

<llo_original>
// kernel: tpu_custom_call.1
$region0: #{tpu_custom_call.1}
  #allocation0 [shape = 'u32[]', space=smem, size = 0x4, offset = 0x4, fixed_abs, tag = 'smem constant byte address 0x4 - core index']
  #allocation1 [shape = 'u32[144,128]{1,0:T(1,128)}', space=vmem, size = 0x12000, scoped, tag = 'internal scratch']
  %s0 = inlined_call_operand.vmem [shape: f32[2,8,16], index: 0, kind: input, shape index: {}]
  %s1 = inlined_call_operand.hbm [shape: f32[2,16,128], index: 1, kind: input, shape index: {}]
  %s2 = inlined_call_operand.vmem [shape: f32[2,8,4], index: 2, kind: input, shape index: {}]
  %s3 = inlined_call_operand.vmem [shape: f32[2,4,128], index: 3, kind: input, shape index: {}]
  %s4 = inlined_call_operand.hbm [shape: f32[2,8,128], index: 4, kind: output, shape index: {}]
  %s5 = sld [smem:[#allocation0]]
  $region53: #{tpu_custom_call.1} parent=0
    _
  %s7 = ssub.s32 1, %s5
  %s8 = scalar_select 0, %s7, %s5
  $region1: #{tpu_custom_call.1} parent=0
    #allocation2 [shape = 'u8[16384]{0}', space=vmem, size = 0x4000, scoped, tag = 'input window, operand 1']
    #allocation3 [shape = 's32[2]{0}', space=sflag, size = 0x8, scoped, tag = 'scoped memory for tpu_custom_call.1']
    #allocation4 [shape = 's32[2]{0}', space=sflag, size = 0x8, scoped, tag = 'scoped memory for tpu_custom_call.1']
    #allocation5 [shape = 'u8[8192]{0}', space=vmem, size = 0x2000, scoped, tag = 'output window, operand 0']
    %9 = vsyncpa [#allocation3], 0
    %s10 = scalar_lea.sflag [#allocation3], 1
    %11 = vsyncpa %s10, 0
    %12 = vsyncpa [#allocation4], 0
    %s13 = scalar_lea.sflag [#allocation4], 1
    %14 = vsyncpa %s13, 0
    loop: start=0, step=1, limit=4
    $region2: #{tpu_custom_call.1} parent=1 // loop_pre_header
      _
    $region3: #{tpu_custom_call.1} parent=1 // loop_header
      %s16 = sphi 0, %s20
      %p17 = scmp.ge.s32.totalorder %s16, 4
      %s23 = sphi 0, %s35
      %s24 = sphi 0, %s31
      %s25 = sphi 0, %s23
      %s26 = sphi 0, %s24
      %s27 = sphi 0, %s25
      %s28 = sphi 0, %s26
      %s40 = sphi 0, %s42
      %s43 = sphi 0, %s40
      %s44 = sphi 0, %s43
      %s60 = sphi 0, %s44
      %s66 = sphi 0, %s68
      %s69 = sphi 0, %s66
      %s70 = sphi 0, %s69
      %s86 = sphi 0, %s70
      %s94 = sphi 0, %s96
      %s97 = sphi 0, %s94
      %s98 = sphi 0, %s97
      %s114 = sphi 0, %s98
      %s120 = sphi 0, %s122
      %s123 = sphi 0, %s120
      %s124 = sphi 0, %s123
      %s140 = sphi 0, %s124
      %s148 = sphi 0, %s150
      %s151 = sphi 0, %s148
      %s152 = sphi 0, %s151
      %s168 = sphi 0, %s152
    $region4: #{tpu_custom_call.1} parent=1 // loop_header_branch
      %19 = sbr.rel (%p17) target = $region8
    $region5: #{tpu_custom_call.1} parent=1 // loop_body
      %s21 = ssub.s32 %s16, 1
      %s22 = ssub.s32 %s16, 2
      %s29 = sadd.s32 1, %s24
      %p30 = scmp.ge.s32.totalorder %s29, 1
      %s31 = scalar_select %p30, 0, %s29
      %s32 = sadd.s32 1, %s23
      %s33 = scalar_select %p30, %s32, %s23
      %p34 = scmp.ge.s32.totalorder %s33, 2
      %s35 = scalar_select %p34, 0, %s33
      %s36 = ssub.s32 %s23, %s35
      %s37 = ssub.s32 %s24, %s31
      %s38 = sor.u32 %s36, %s37
      %p39 = scmp.eq.s32.totalorder %s38, 0
      %s41 = sadd.s32 %s40, 1
      %s42 = scalar_select %p39, %s40, %s41
      %p45 = pneg %p39
      %p46 = scmp.eq.s32.totalorder %s16, 1
      %p47 = por %p45, %p46
      %p48 = scmp.ne.s32.totalorder %s40, %s43
      %p49 = scmp.eq.s32.totalorder %s16, 0
      %p50 = por %p48, %p49
      %p51 = scmp.ne.s32.totalorder %s40, %s43
      %p52 = scmp.eq.s32.totalorder %s21, 1
      %p53 = por %p51, %p52
      %p54 = scmp.ne.s32.totalorder %s43, %s44
      %p55 = scmp.eq.s32.totalorder %s21, 0
      %p56 = por %p54, %p55
      %p57 = scmp.ne.s32.totalorder %s43, %s44
      %p58 = scmp.eq.s32.totalorder %s22, 1
      %p59 = por %p57, %p58
      %p61 = scmp.ne.s32.totalorder %s44, %s60
      %p62 = scmp.eq.s32.totalorder %s22, 0
      %p63 = por %p61, %p62
      %s64 = ssub.s32 %s23, %s35
      %p65 = scmp.eq.s32.totalorder %s64, 0
      %s67 = sadd.s32 %s66, 1
      %s68 = scalar_select %p65, %s66, %s67
      %p71 = pneg %p65
      %p72 = scmp.eq.s32.totalorder %s16, 1
      %p73 = por %p71, %p72
      %p74 = scmp.ne.s32.totalorder %s66, %s69
      %p75 = scmp.eq.s32.totalorder %s16, 0
      %p76 = por %p74, %p75
      %p77 = scmp.ne.s32.totalorder %s66, %s69
      %p78 = scmp.eq.s32.totalorder %s21, 1
      %p79 = por %p77, %p78
      %p80 = scmp.ne.s32.totalorder %s69, %s70
      %p81 = scmp.eq.s32.totalorder %s21, 0
      %p82 = por %p80, %p81
      %p83 = scmp.ne.s32.totalorder %s69, %s70
      %p84 = scmp.eq.s32.totalorder %s22, 1
      %p85 = por %p83, %p84
      %p87 = scmp.ne.s32.totalorder %s70, %s86
      %p88 = scmp.eq.s32.totalorder %s22, 0
      %p89 = por %p87, %p88
      %s90 = ssub.s32 %s23, %s35
      %s91 = ssub.s32 %s24, %s31
      %s92 = sor.u32 %s90, %s91
      %p93 = scmp.eq.s32.totalorder %s92, 0
      %s95 = sadd.s32 %s94, 1
      %s96 = scalar_select %p93, %s94, %s95
      %p99 = pneg %p93
      %p100 = scmp.eq.s32.totalorder %s16, 1
      %p101 = por %p99, %p100
      %p102 = scmp.ne.s32.totalorder %s94, %s97
      %p103 = scmp.eq.s32.totalorder %s16, 0
      %p104 = por %p102, %p103
      %p105 = scmp.ne.s32.totalorder %s94, %s97
      %p106 = scmp.eq.s32.totalorder %s21, 1
      %p107 = por %p105, %p106
      %p108 = scmp.ne.s32.totalorder %s97, %s98
      %p109 = scmp.eq.s32.totalorder %s21, 0
      %p110 = por %p108, %p109
      %p111 = scmp.ne.s32.totalorder %s97, %s98
      %p112 = scmp.eq.s32.totalorder %s22, 1
      %p113 = por %p111, %p112
      %p115 = scmp.ne.s32.totalorder %s98, %s114
      %p116 = scmp.eq.s32.totalorder %s22, 0
      %p117 = por %p115, %p116
      %s118 = ssub.s32 %s23, %s35
      %p119 = scmp.eq.s32.totalorder %s118, 0
      %s121 = sadd.s32 %s120, 1
      %s122 = scalar_select %p119, %s120, %s121
      %p125 = pneg %p119
      %p126 = scmp.eq.s32.totalorder %s16, 1
      %p127 = por %p125, %p126
      %p128 = scmp.ne.s32.totalorder %s120, %s123
      %p129 = scmp.eq.s32.totalorder %s16, 0
      %p130 = por %p128, %p129
      %p131 = scmp.ne.s32.totalorder %s120, %s123
      %p132 = scmp.eq.s32.totalorder %s21, 1
      %p133 = por %p131, %p132
      %p134 = scmp.ne.s32.totalorder %s123, %s124
      %p135 = scmp.eq.s32.totalorder %s21, 0
      %p136 = por %p134, %p135
      %p137 = scmp.ne.s32.totalorder %s123, %s124
      %p138 = scmp.eq.s32.totalorder %s22, 1
      %p139 = por %p137, %p138
      %p141 = scmp.ne.s32.totalorder %s124, %s140
      %p142 = scmp.eq.s32.totalorder %s22, 0
      %p143 = por %p141, %p142
      %s144 = ssub.s32 %s23, %s35
      %s145 = ssub.s32 %s24, %s31
      %s146 = sor.u32 %s144, %s145
      %p147 = scmp.eq.s32.totalorder %s146, 0
      %s149 = sadd.s32 %s148, 1
      %s150 = scalar_select %p147, %s148, %s149
      %p153 = pneg %p147
      %p154 = scmp.eq.s32.totalorder %s16, 1
      %p155 = por %p153, %p154
      %p156 = scmp.ne.s32.totalorder %s148, %s151
      %p157 = scmp.eq.s32.totalorder %s16, 0
      %p158 = por %p156, %p157
      %p159 = scmp.ne.s32.totalorder %s148, %s151
      %p160 = scmp.eq.s32.totalorder %s21, 1
      %p161 = por %p159, %p160
      %p162 = scmp.ne.s32.totalorder %s151, %s152
      %p163 = scmp.eq.s32.totalorder %s21, 0
      %p164 = por %p162, %p163
      %p165 = scmp.ne.s32.totalorder %s151, %s152
      %p166 = scmp.eq.s32.totalorder %s22, 1
      %p167 = por %p165, %p166
      %p169 = scmp.ne.s32.totalorder %s152, %s168
      %p170 = scmp.eq.s32.totalorder %s22, 0
      %p171 = por %p169, %p170
      %p172 = scmp.le.s32.totalorder 1, %s16
      %p173 = scmp.lt.s32.totalorder %s16, 3
      %p174 = pnand %p172, %p173
      %p175 = pneg %p174
      // Predicated region
      $region9: #{tpu_custom_call.1} parent=5 // pred_check
        _
      $region10: #{tpu_custom_call.1} parent=5 // pred_check_branch
        %177 = sbr.rel (%p174) target = $region12
      $region11: #{tpu_custom_call.1} parent=5 // pred_region
        %s178 = ssub.s32 %s16, 1
      $region12: #{tpu_custom_call.1} parent=5 // pred_fallthru
        _
      %p179 = scmp.lt.s32.totalorder %s16, 2
      // Predicated region
      $region13: #{tpu_custom_call.1} parent=5 // pred_check
        %p180 = pneg %p179
      $region14: #{tpu_custom_call.1} parent=5 // pred_check_branch
        %182 = sbr.rel (%p180) target = $region16
      $region15: #{tpu_custom_call.1} parent=5 // pred_region
        // Predicated region
        $region17: #{tpu_custom_call.1} parent=15 // pred_check
          %p183 = pneg %p50
        $region18: #{tpu_custom_call.1} parent=15 // pred_check_branch
          %185 = sbr.rel (%p183) target = $region20
        $region19: #{tpu_custom_call.1} parent=15 // pred_region
          %p186 = scmp.lt.s32.totalorder %s23, 1
          %s187 = scalar_select %p186, %s23, 1
          %p188 = scmp.lt.s32.totalorder %s24, 0
          %s189 = scalar_select %p188, %s24, 0
          %s190 = sadd.s32 %s189, %s187
          %s191 = smul.addr %s190, 8
          %s192 = scalar_lea.vmem %s0, %s191
        $region20: #{tpu_custom_call.1} parent=15 // pred_fallthru
          _
        // Predicated region
        $region21: #{tpu_custom_call.1} parent=15 // pred_check
          %p193 = pneg %p76
        $region22: #{tpu_custom_call.1} parent=15 // pred_check_branch
          %195 = sbr.rel (%p193) target = $region24
        $region23: #{tpu_custom_call.1} parent=15 // pred_region
          %s196 = sand.u32 %s66, 1
          %s197 = scalar_lea.sflag [#allocation3], %s196
          %s198 = sand.u32 %s66, 1
          %s199 = smul.addr %s198, 16
          %s200 = scalar_lea.vmem [#allocation2], %s199
          %s202 = ssub.s32 256, 256
          %203 = vsyncadd %s197, %s202
          %s204 = smul.addr %s23, 2
          %s205 = smul.addr %s204, 128
          %s206 = scalar_lea.hbm %s1, %s205
          %s207 = sshll.u32 %s200, 4
          %s208 = int_to_ptr.vmem [resolvable:$true] %s207
          %213 = dma.hbm_to_vmem [thread:$0]  %s206, 256, %s208, %s197, 128, 128, 8
        $region24: #{tpu_custom_call.1} parent=15 // pred_fallthru
          _
        // Predicated region
        $region25: #{tpu_custom_call.1} parent=15 // pred_check
          %p214 = pneg %p104
        $region26: #{tpu_custom_call.1} parent=15 // pred_check_branch
          %216 = sbr.rel (%p214) target = $region28
        $region27: #{tpu_custom_call.1} parent=15 // pred_region
          %p217 = scmp.lt.s32.totalorder %s23, 1
          %s218 = scalar_select %p217, %s23, 1
          %p219 = scmp.lt.s32.totalorder %s24, 0
          %s220 = scalar_select %p219, %s24, 0
          %s221 = sadd.s32 %s220, %s218
          %s222 = smul.addr %s221, 8
          %s223 = scalar_lea.vmem %s2, %s222
        $region28: #{tpu_custom_call.1} parent=15 // pred_fallthru
          _
        // Predicated region
        $region29: #{tpu_custom_call.1} parent=15 // pred_check
          %p224 = pneg %p130
        $region30: #{tpu_custom_call.1} parent=15 // pred_check_branch
          %226 = sbr.rel (%p224) target = $region32
        $region31: #{tpu_custom_call.1} parent=15 // pred_region
          %p227 = scmp.lt.s32.totalorder %s23, 1
          %s228 = scalar_select %p227, %s23, 1
          %s229 = smul.addr %s228, 4
          %s230 = scalar_lea.vmem %s3, %s229
        $region32: #{tpu_custom_call.1} parent=15 // pred_fallthru
          _
      $region16: #{tpu_custom_call.1} parent=5 // pred_fallthru
        _
      %p231 = scmp.le.s32.totalorder 1, %s16
      %p232 = scmp.lt.s32.totalorder %s16, 3
      %p233 = pnand %p231, %p232
      %p234 = pneg %p233
      // Predicated region
      $region33: #{tpu_custom_call.1} parent=5 // pred_check
        _
      $region34: #{tpu_custom_call.1} parent=5 // pred_check_branch
        %236 = sbr.rel (%p233) target = $region36
      $region35: #{tpu_custom_call.1} parent=5 // pred_region
        %s237 = ssub.s32 %s16, 1
        %s238 = sand.u32 %s69, 1
        %s239 = scalar_lea.sflag [#allocation3], %s238
        %s240 = sand.u32 %s69, 1
        %s241 = smul.addr %s240, 16
        %s242 = scalar_lea.vmem [#allocation2], %s241
        // Predicated region
        $region37: #{tpu_custom_call.1} parent=35 // pred_check
          %p243 = pneg %p82
        $region38: #{tpu_custom_call.1} parent=35 // pred_check_branch
          %245 = sbr.rel (%p243) target = $region40
        $region39: #{tpu_custom_call.1} parent=35 // pred_region
          %246 = dma.done %s239, 256
        $region40: #{tpu_custom_call.1} parent=35 // pred_fallthru
          _
        %p247 = scmp.lt.s32.totalorder %s25, 1
        %s248 = scalar_select %p247, %s25, 1
        %p249 = scmp.lt.s32.totalorder %s26, 0
        %s250 = scalar_select %p249, %s26, 0
        %s251 = sadd.s32 %s250, %s248
        %s252 = smul.addr %s251, 8
        %s253 = scalar_lea.vmem %s0, %s252
        %p254 = pneg %p56
        %p255 = pneg %p53
        %s256 = sand.u32 %s69, 1
        %s257 = scalar_lea.sflag [#allocation3], %s256
        %s258 = sand.u32 %s69, 1
        %s259 = smul.addr %s258, 16
        %s260 = scalar_lea.vmem [#allocation2], %s259
        %p261 = pneg %p82
        %p262 = pneg %p79
        %p263 = scmp.lt.s32.totalorder %s25, 1
        %s264 = scalar_select %p263, %s25, 1
        %p265 = scmp.lt.s32.totalorder %s26, 0
        %s266 = scalar_select %p265, %s26, 0
        %s267 = sadd.s32 %s266, %s264
        %s268 = smul.addr %s267, 8
        %s269 = scalar_lea.vmem %s2, %s268
        %p270 = pneg %p110
        %p271 = pneg %p107
        %p272 = scmp.lt.s32.totalorder %s25, 1
        %s273 = scalar_select %p272, %s25, 1
        %s274 = smul.addr %s273, 4
        %s275 = scalar_lea.vmem %s3, %s274
        %p276 = pneg %p136
        %p277 = pneg %p133
        %p278 = pneg %p164
        %p279 = pneg %p161
        %s280 = sand.u32 %s151, 1
        %s281 = scalar_lea.sflag [#allocation4], %s280
        %s282 = sand.u32 %s151, 1
        %s283 = smul.addr %s282, 8
        %s284 = scalar_lea.vmem [#allocation5], %s283
        %p285 = scmp.lt.s32.totalorder %s25, 1
        %s286 = scalar_select %p285, %s25, 1
        %p287 = scmp.lt.s32.totalorder %s26, 0
        %s288 = scalar_select %p287, %s26, 0
        %s289 = sadd.s32 %s288, %s286
        %s290 = smul.addr %s289, 8
        %s291 = scalar_lea.vmem %s0, %s290
        %p292 = scmp.lt.s32.totalorder %s25, 1
        %s293 = scalar_select %p292, %s25, 1
        %p294 = scmp.lt.s32.totalorder %s26, 0
        %s295 = scalar_select %p294, %s26, 0
        %s296 = sadd.s32 %s295, %s293
        %s297 = smul.addr %s296, 8
        %s298 = scalar_lea.vmem %s2, %s297
        %p299 = scmp.lt.s32.totalorder %s25, 1
        %s300 = scalar_select %p299, %s25, 1
        %s301 = smul.addr %s300, 4
        %s302 = scalar_lea.vmem %s3, %s301
        %v303 = vld [vmem:[%s291] sm:$0xff]
        %vm304 = vcmask 130048
        %v305 = vsel %vm304, %v303, -inf
        %306 = vmax.xlane.f32.xlu0 %v305
        %v307 = vpop.xlane.xlu0 %306
        %v308 = vsub.f32 %v303, %v307
        %v309 = vmul.f32 %v308, 1.442695
        %v310 = vpow.pop %v309
        %v311 = vsel %vm304, %v310, 0.0
        %312 = vadd.xlane.f32.xlu0 %v311
        %v313 = vpop.xlane.xlu0 %312
        %v314 = vrcp.pop %v313
        %v315 = vmul.f32 %v310, %v314
        %v316 = vld [vmem:[%s242] sm:$0xff]
        %v317 = vld [vmem:[%s242 + $0x8] sm:$0xff]
        %v318 = vld [vmem:[%s298] sm:$0xff]
        %v319 = vld [vmem:[%s302] sm:$0xf]
        %321 = vrot.lane.b32.xlu0 %v318, 2
        %v322 = vpop.permute.xlu0 %321
        %v324 = vsub.f32 %v318, %v322
        %326 = vrot.lane.b32.xlu0 %v324, 127
        %v327 = vpop.permute.xlu0 %326
        %v329 = vmul.f32 %v324, %v327
        %v331 = vrot.slane %v319, 6
        %v333 = vsub.f32 %v319, %v331
        %v335 = vrot.slane %v333, 1
        %v337 = vmul.f32 %v333, %v335
        %338 = vset.pattern.permute.xlu0 0
        %339 = vperm.xlu0 %338, %v318
        %v340 = vpop.permute.xlu0 %339
        %342 = vset.pattern.permute.xlu0 1
        %343 = vperm.xlu0 %342, %v318
        %v344 = vpop.permute.xlu0 %343
        %346 = vset.pattern.permute.xlu0 2
        %347 = vperm.xlu0 %346, %v318
        %v348 = vpop.permute.xlu0 %347
        %350 = vset.pattern.permute.xlu0 3
        %351 = vperm.xlu0 %350, %v318
        %v352 = vpop.permute.xlu0 %351
        %v354 = vlaneseq
        %v355 = vshrl.u32 %v354, 7
        %v356 = vsub.s32 0, %v355
        %v357 = vrot.slane %v319, %v356
        %v358 = vlaneseq
        %v359 = vshrl.u32 %v358, 7
        %v360 = vsub.s32 1, %v359
        %v361 = vrot.slane %v319, %v360
        %v362 = vlaneseq
        %v363 = vshrl.u32 %v362, 7
        %v364 = vsub.s32 2, %v363
        %v365 = vrot.slane %v319, %v364
        %v366 = vlaneseq
        %v367 = vshrl.u32 %v366, 7
        %v368 = vsub.s32 3, %v367
        %v369 = vrot.slane %v319, %v368
        %371 = vset.pattern.permute.xlu0 2
        %372 = vperm.xlu0 %371, %v329
        %v373 = vpop.permute.xlu0 %372
        %v375 = vlaneseq
        %v376 = vshrl.u32 %v375, 7
        %v377 = vsub.s32 2, %v376
        %v378 = vrot.slane %v337, %v377
        %v379 = vmax.f32 %v340, %v357
        %v380 = vmax.f32 %v344, %v361
        %v381 = vmin.f32 %v348, %v365
        %v382 = vmin.f32 %v352, %v369
        %v383 = vsub.f32 %v381, %v379
        %v384 = vmax.f32 %v383, 0.0
        %v385 = vsub.f32 %v382, %v380
        %v386 = vmax.f32 %v385, 0.0
        %v387 = vmul.f32 %v384, %v386
        %v388 = vadd.f32 %v373, %v378
        %v389 = vsub.f32 %v388, %v387
        %v390 = vrcp.pop %v389
        %v391 = vmul.f32 %v387, %v390
        %v392 = vmin.f32 %v340, %v357
        %v393 = vmin.f32 %v344, %v361
        %v394 = vmax.f32 %v348, %v365
        %v395 = vmax.f32 %v352, %v369
        %v396 = vsub.f32 %v394, %v392
        %v397 = vmax.f32 %v396, 0.0
        %v398 = vsub.f32 %v395, %v393
        %v399 = vmax.f32 %v398, 0.0
        %v400 = vmul.f32 %v397, %v399
        %v401 = vsub.f32 %v400, %v389
        %v402 = vrcp.pop %v400
        %v403 = vmul.f32 %v401, %v402
        %v404 = vsub.f32 %v403, %v391
        %v406 = vsel %vm304, %v315, 0
        %408 = vmatprep.subr.mxu0 0.0
        %409 = vmatpush1.msra.mxu0 0.0
        %410 = vmatprep.subr.mxu0 0.0
        %411 = vmatpush1.msra.mxu0 0.0
        %412 = vmatprep.subr.mxu0 0.0
        %413 = vmatpush1.msra.mxu0 0.0
        %414 = vmatprep.subr.mxu0 0.0
        %415 = vmatpush1.msra.mxu0 0.0
        %416 = vmatprep.subr.mxu0 0.0
        %417 = vmatpush1.msra.mxu0 0.0
        %418 = vmatprep.subr.mxu0 0.0
        %419 = vmatpush1.msra.mxu0 0.0
        %420 = vmatprep.subr.mxu0 0.0
        %421 = vmatpush1.msra.mxu0 0.0
        %422 = vmatprep.subr.mxu0 0.0
        %423 = vmatpush1.msra.mxu0 0.0
        %424 = vmatprep.subr.mxu0 0.0
        %425 = vmatpush1.msra.mxu0 0.0
        %426 = vmatprep.subr.mxu0 0.0
        %427 = vmatpush1.msra.mxu0 0.0
        %428 = vmatprep.subr.mxu0 0.0
        %429 = vmatpush1.msra.mxu0 0.0
        %430 = vmatprep.subr.mxu0 0.0
        %431 = vmatpush1.msra.mxu0 0.0
        %432 = vmatprep.subr.mxu0 0.0
        %433 = vmatpush1.msra.mxu0 0.0
        %434 = vmatprep.subr.mxu0 0.0
        %435 = vmatpush1.msra.mxu0 0.0
        %436 = vmatprep.subr.mxu0 0.0
        %437 = vmatpush1.msra.mxu0 %v317
        %438 = vmatprep.subr.mxu0 0.0
        %439 = vmatpush1.msra.mxu0 %v316
        %440 = vmatprep.subr.mxu0 0.0
        %441 = vmatpush2.msra.mxu0 0.0
        %442 = vmatprep.subr.mxu0 0.0
        %443 = vmatpush2.msra.mxu0 0.0
        %444 = vmatprep.subr.mxu0 0.0
        %445 = vmatpush2.msra.mxu0 0.0
        %446 = vmatprep.subr.mxu0 0.0
        %447 = vmatpush2.msra.mxu0 0.0
        %448 = vmatprep.subr.mxu0 0.0
        %449 = vmatpush2.msra.mxu0 0.0
        %450 = vmatprep.subr.mxu0 0.0
        %451 = vmatpush2.msra.mxu0 0.0
        %452 = vmatprep.subr.mxu0 0.0
        %453 = vmatpush2.msra.mxu0 0.0
        %454 = vmatprep.subr.mxu0 0.0
        %455 = vmatpush2.msra.mxu0 0.0
        %456 = vmatprep.subr.mxu0 0.0
        %457 = vmatpush2.msra.mxu0 0.0
        %458 = vmatprep.subr.mxu0 0.0
        %459 = vmatpush2.msra.mxu0 0.0
        %460 = vmatprep.subr.mxu0 0.0
        %461 = vmatpush2.msra.mxu0 0.0
        %462 = vmatprep.subr.mxu0 0.0
        %463 = vmatpush2.msra.mxu0 0.0
        %464 = vmatprep.subr.mxu0 0.0
        %465 = vmatpush2.msra.mxu0 0.0
        %466 = vmatprep.subr.mxu0 0.0
        %467 = vmatpush2.msra.mxu0 0.0
        %468 = vmatprep.subr.mxu0 0.0
        %469 = vmatpush2.msra.mxu0 0.0
        %470 = vmatprep.subr.mxu0 0.0
        %471 = vmatpush2.msra.mxu0 0.0
        %472 = vmatprep.mubr.f32.mxu0 0.0
        %473 = vmatmul.mubr.f32.gmra.mxu0 %v406
        %v474 = vpop.f32.mrf.mxu0
        %v475 = vadd.f32 %v404, %v474
        %v476 = vpop.f32.mrf.mxu0
        %477 = vdwg.mxu0
        %v478 = vsub.f32 %v340, %v357
        %v479 = vand.u32 2147483647, %v478
        %v480 = vsub.f32 %v344, %v361
        %v481 = vand.u32 2147483647, %v480
        %v482 = vadd.f32 %v479, %v481
        %v483 = vsub.f32 %v348, %v365
        %v484 = vand.u32 2147483647, %v483
        %v485 = vadd.f32 %v482, %v484
        %v486 = vsub.f32 %v352, %v369
        %v487 = vand.u32 2147483647, %v486
        %v488 = vadd.f32 %v485, %v487
        %v489 = vadd.f32 %v475, %v488
        %490 = vst [vmem:[%s284] sm:$0xff] %v489
        %s491 = sand.u32 %s151, 1
        %s492 = scalar_lea.sflag [#allocation4], %s491
        %s493 = sand.u32 %s151, 1
        %s494 = smul.addr %s493, 8
        %s495 = scalar_lea.vmem [#allocation5], %s494
        // Predicated region
        $region41: #{tpu_custom_call.1} parent=35 // pred_check
          %p496 = pneg %p161
        $region42: #{tpu_custom_call.1} parent=35 // pred_check_branch
          %498 = sbr.rel (%p496) target = $region44
        $region43: #{tpu_custom_call.1} parent=35 // pred_region
          %s500 = ssub.s32 128, 128
          %501 = vsyncadd %s492, %s500
          %s502 = sadd.s32 %s26, %s25
          %s503 = smul.addr %s502, 128
          %s504 = scalar_lea.hbm %s4, %s503
          %s506 = sshll.u32 %s495, 4
          %s507 = int_to_ptr.vmem [resolvable:$true] %s506
          %509 = dma.vmem_to_hbm [thread:$0]  %s507, 128, %s504, %s492
        $region44: #{tpu_custom_call.1} parent=35 // pred_fallthru
          _
      $region36: #{tpu_custom_call.1} parent=5 // pred_fallthru
        _
      %p510 = scmp.le.s32.totalorder 2, %s16
      // Predicated region
      $region45: #{tpu_custom_call.1} parent=5 // pred_check
        %p511 = pneg %p510
      $region46: #{tpu_custom_call.1} parent=5 // pred_check_branch
        %513 = sbr.rel (%p511) target = $region48
      $region47: #{tpu_custom_call.1} parent=5 // pred_region
        %s514 = ssub.s32 %s16, 2
        // Predicated region
        $region49: #{tpu_custom_call.1} parent=47 // pred_check
          %p515 = pneg %p167
        $region50: #{tpu_custom_call.1} parent=47 // pred_check_branch
          %517 = sbr.rel (%p515) target = $region52
        $region51: #{tpu_custom_call.1} parent=47 // pred_region
          %s518 = sand.u32 %s152, 1
          %s519 = scalar_lea.sflag [#allocation4], %s518
          %s520 = sand.u32 %s152, 1
          %s521 = smul.addr %s520, 8
          %s522 = scalar_lea.vmem [#allocation5], %s521
          %523 = dma.done %s519, 128
        $region52: #{tpu_custom_call.1} parent=47 // pred_fallthru
          _
      $region48: #{tpu_custom_call.1} parent=5 // pred_fallthru
        _
    $region6: #{tpu_custom_call.1} parent=1 // loop_footer
      %s20 = sadd.s32 1, %s16
    $region7: #{tpu_custom_call.1} parent=1 // loop_footer_branch
      %15 = sbr.rel target = $region3
    $region8: #{tpu_custom_call.1} parent=1 // loop_exit
      _
    %524 = vsyncpa [#allocation3], 1
    %s525 = scalar_lea.sflag [#allocation3], 1
    %526 = vsyncpa %s525, 1
    %527 = vsyncpa [#allocation4], 1
    %s528 = scalar_lea.sflag [#allocation4], 1
    %529 = vsyncpa %s528, 1

</llo_original>
